<compile_context>
chip_gen: v6e
topology: v6e:2x2x1
jax: 0.10.0
libtpu: 0.0.40
codegen_flags: <defaults>
</compile_context>

<pallas_src>
import jax
import jax.numpy as jnp
from jax.experimental import pallas as pl
from jax.experimental.pallas import tpu as pltpu


def seq_model_kernel(x_ref, w_ref, b_ref, o_ref):
    # x_ref: (BT, K)      batch tile of flattened x (K = L*C_in, lane axis of the load)
    # w_ref: (C_out, K)   folded conv-taps + time-mean weight (pre-transposed)
    # b_ref: (C_out, 1)   bias (kept in f32)
    # o_ref: (C_out, BT)  transposed output tile -> lane axis = BT (dense stores)
    #
    # A @ B^T contraction (same NT form as flash-attention q @ k^T); no cross-row
    # (over-BT) computation, so garbage rows in a partial last block are harmless
    # (Pallas clips the output write).
    acc = jax.lax.dot_general(
        w_ref[...], x_ref[...],
        dimension_numbers=(((1,), (1,)), ((), ())),
        preferred_element_type=jnp.float32,
    )                                                    # (C_out, BT), f32 accumulate
    o_ref[...] = (acc + b_ref[...]).astype(o_ref.dtype)


def seq_model_forward(x, weight, bias, w, *, compute_dtype=None):
    """x: (B, T, C_in)  (2-D input follows torch: treated as C_in = N, T = 1);
       weight: (C_out, C_in, W) [PyTorch Conv1d layout]; bias: (C_out,)."""
    if x.ndim < 3:
        # torch: x.unsqueeze(1).permute(0, 2, 1) -> conv input (B, C_in=N, T=1)
        x = x[:, None, :]
    out_dtype = x.dtype
    if compute_dtype is not None:
        # Optional bf16 streaming of x (review item); acc stays f32 in the kernel.
        x = x.astype(compute_dtype)

    B, L, C_in = x.shape
    C_out = weight.shape[0]
    t_out = L - w + 1
    if t_out < 1:
        raise ValueError(f"sequence length {L} must be >= conv kernel width {w}")
    K = L * C_in

    # Fold conv taps + time-mean into one effective weight (tiny, computed once).
    w_t = jnp.transpose(weight, (2, 1, 0)).astype(jnp.float32)   # (W, C_in, C_out)
    w_eff = jnp.zeros((L, C_in, C_out), jnp.float32)
    for k in range(w):                                           # w is small & static
        w_eff = w_eff.at[k:k + t_out].add(w_t[k])
    w_eff = (w_eff / jnp.float32(t_out)).reshape(K, C_out)
    # Note: casting w_eff to x.dtype loses a little precision if x is bf16/int8;
    # accumulation is still f32, bias stays f32.
    w2 = jnp.transpose(w_eff, (1, 0)).astype(x.dtype)            # (C_out, K)
    b2 = bias.reshape(C_out, 1).astype(jnp.float32)

    x_flat = x.reshape(B, K)             # free reshape (row-major); lane axis = K

    # ---- batch-tile sizing (byte budget, generation aware) -----------------
    itemsize = jnp.dtype(x.dtype).itemsize
    out_itemsize = jnp.dtype(out_dtype).itemsize
    per_row = K * itemsize + C_out * out_itemsize        # x row read + out row write
    try:
        vmem_cap = int(pltpu.get_tpu_info().vmem_capacity_bytes)
    except Exception:                                    # conservative default
        vmem_cap = 64 * 1024 * 1024                      # v7x per-core VMEM
    block_budget = min(8 * 1024 * 1024, vmem_cap // 8)   # per-step x+out bytes (x2 buffered)

    w_bytes = C_out * K * itemsize
    vmem_need = 2 * block_budget + 2 * w_bytes + (4 << 20)
    vmem_limit = min(max(vmem_need, 32 << 20), (vmem_cap * 3) // 4)

    # BT: as large as the budget allows, capped at ~B/2 so the grid has >= 2 steps
    # for v7x's two TensorCores.  128-aligned => multiple of every dtype's sublane
    # tile (8/16/32) AND a legal lane extent for the transposed output block.
    bt_budget = max(128, (block_budget // max(per_row, 1)) // 128 * 128)
    bt_half = ((pl.cdiv(B, 2) + 127) // 128) * 128
    bt = min(bt_budget, bt_half)
    if bt >= B:
        bt = B                           # single step: block spans the full batch dim

    out_t = pl.pallas_call(
        seq_model_kernel,
        out_shape=jax.ShapeDtypeStruct((C_out, B), out_dtype),
        grid=(pl.cdiv(B, bt),),
        in_specs=[
            pl.BlockSpec((bt, K), lambda i: (i, 0)),         # batch tile of x
            pl.BlockSpec((C_out, K), lambda i: (0, 0)),      # full folded weight
            pl.BlockSpec((C_out, 1), lambda i: (0, 0)),      # bias
        ],
        out_specs=pl.BlockSpec((C_out, bt), lambda i: (0, i)),
        compiler_params=pltpu.CompilerParams(
            dimension_semantics=("parallel",),
            vmem_limit_bytes=int(vmem_limit),
        ),
    )(x_flat, w2, b2)

    return jnp.transpose(out_t, (1, 0))                     # (B, C_out)


def _reference(x, weight, bias, w):
    # Pure-JAX reference in the original op order: conv1d (valid) then mean over time.
    if x.ndim < 3:
        x = x[:, None, :]
    B, L, C_in = x.shape
    t_out = L - w + 1
    cols = jnp.stack([x[:, k:k + t_out, :] for k in range(w)], axis=-1)  # (B, T, C_in, W)
    y = jnp.einsum("btcw,ocw->bto", cols, weight) + bias                 # conv1d output
    return jnp.mean(y, axis=1)                                           # mean over time


if __name__ == "__main__":
    # module config: seq_model(ind=4, outd=8, w=3)
    ind, outd, w = 4, 8, 3
    B, L = 2, 16

    key = jax.random.PRNGKey(0)
    kx, kw, kb = jax.random.split(key, 3)

    x = jax.random.normal(kx, (B, L, ind), dtype=jnp.float32)

    # deterministic init matching PyTorch Conv1d default: U(-sqrt(k), sqrt(k)), k = 1/(ind*w)
    bound = 1.0 / jnp.sqrt(jnp.float32(ind * w))
    weight = jax.random.uniform(kw, (outd, ind, w), jnp.float32, -bound, bound)
    bias = jax.random.uniform(kb, (outd,), jnp.float32, -bound, bound)

    out = seq_model_forward(x, weight, bias, w)
    out = jax.block_until_ready(out)

    ref = _reference(x, weight, bias, w)
    assert out.shape == (B, outd)
    assert jnp.allclose(out, ref, atol=1e-5, rtol=1e-5), "mismatch vs reference"

    print("KERNEL_OK")
</pallas_src>

<mosaic_0001>
module attributes {stable_mosaic.version = 11 : i64} {
  func.func @seq_model_kernel(%arg0: i32, %arg1: memref<2x64xf32, #tpu.memory_space<vmem>>, %arg2: memref<8x64xf32, #tpu.memory_space<vmem>>, %arg3: memref<8x1xf32, #tpu.memory_space<vmem>>, %arg4: memref<8x2xf32, #tpu.memory_space<vmem>>) attributes {dimension_semantics = [#tpu.dimension_semantics<parallel>], iteration_bounds = array<i64: 1>, scalar_prefetch = 0 : i64, scratch_operands = 0 : i64, tpu.core_type = #tpu.core_type<tc>, window_params = [{transform_indices = @transform_0, window_bounds = array<i64: 2, 64>}, {pipeline_mode = #tpu.pipeline_mode<synchronous>, transform_indices = @transform_1, window_bounds = array<i64: 8, 64>}, {pipeline_mode = #tpu.pipeline_mode<synchronous>, transform_indices = @transform_2, window_bounds = array<i64: 8, 1>}, {transform_indices = @transform_3, window_bounds = array<i64: 8, 2>}]} {
    %c0 = arith.constant 0 : index
    %c0_0 = arith.constant 0 : index
    %0 = vector.load %arg2[%c0, %c0_0] : memref<8x64xf32, #tpu.memory_space<vmem>>, vector<8x64xf32>
    %c0_1 = arith.constant 0 : index
    %c0_2 = arith.constant 0 : index
    %1 = vector.load %arg1[%c0_1, %c0_2] : memref<2x64xf32, #tpu.memory_space<vmem>>, vector<2x64xf32>
    %cst = arith.constant dense<0.000000e+00> : vector<8x2xf32>
    %2 = tpu.matmul %0, %1, %cst {dimension_numbers = #tpu.dot_dimension_numbers<[1], [1], [0], [0], [0, 0, 1, 0], [], []>} : vector<8x64xf32>, vector<2x64xf32>, vector<8x2xf32> -> vector<8x2xf32>
    %c0_3 = arith.constant 0 : index
    %c0_4 = arith.constant 0 : index
    %3 = vector.load %arg3[%c0_3, %c0_4] : memref<8x1xf32, #tpu.memory_space<vmem>>, vector<8x1xf32>
    %4 = vector.broadcast %3 : vector<8x1xf32> to vector<8x2xf32>
    %5 = arith.addf %2, %4 : vector<8x2xf32>
    %c0_5 = arith.constant 0 : index
    %c0_6 = arith.constant 0 : index
    %6 = vector.load %arg4[%c0_5, %c0_6] : memref<8x2xf32, #tpu.memory_space<vmem>>, vector<8x2xf32>
    tpu.vector_store %arg4[%c0_5, %c0_6], %5 {strides = array<i32>} : memref<8x2xf32, #tpu.memory_space<vmem>>, vector<8x2xf32>,
    return
  }
  func.func @transform_0(%arg0: i32) -> (i32, i32) {
    %c0_i32 = arith.constant 0 : i32
    %c0_i32_0 = arith.constant 0 : i32
    return %arg0, %c0_i32 : i32, i32
  }
  func.func @transform_1(%arg0: i32) -> (i32, i32) {
    %c0_i32 = arith.constant 0 : i32
    %c0_i32_0 = arith.constant 0 : i32
    %c0_i32_1 = arith.constant 0 : i32
    return %c0_i32, %c0_i32_0 : i32, i32
  }
  func.func @transform_2(%arg0: i32) -> (i32, i32) {
    %c0_i32 = arith.constant 0 : i32
    %c0_i32_0 = arith.constant 0 : i32
    %c0_i32_1 = arith.constant 0 : i32
    return %c0_i32, %c0_i32_0 : i32, i32
  }
  func.func @transform_3(%arg0: i32) -> (i32, i32) {
    %c0_i32 = arith.constant 0 : i32
    %c0_i32_0 = arith.constant 0 : i32
    return %c0_i32, %arg0 : i32, i32
  }
}

</mosaic_0001>

<llo_original>
// kernel: tpu_custom_call.1
$region0: #{tpu_custom_call.1}
  #allocation0 [shape = 'u32[]', space=smem, size = 0x4, offset = 0x4, fixed_abs, tag = 'smem constant byte address 0x4 - core index']
  #allocation1 [shape = 'u32[144,128]{1,0:T(1,128)}', space=vmem, size = 0x12000, scoped, tag = 'internal scratch']
  %s0 = inlined_call_operand.vmem [shape: f32[2,64], index: 0, kind: input, shape index: {}]
  %s1 = inlined_call_operand.vmem [shape: f32[8,64], index: 1, kind: input, shape index: {}]
  %s2 = inlined_call_operand.vmem [shape: f32[8,1], index: 2, kind: input, shape index: {}]
  %s3 = inlined_call_operand.vmem [shape: f32[8,2], index: 3, kind: output, shape index: {}]
  %s4 = sld [smem:[#allocation0]]
  $region22: #{tpu_custom_call.1} parent=0
    _
  %s6 = ssub.s32 1, %s4
  %s7 = scalar_select 0, %s6, %s4
  // Predicated region
  $region2: #{tpu_custom_call.1} parent=0 // pred_check
    _
  $region3: #{tpu_custom_call.1} parent=0 // pred_check_branch
    %9 = sbr.rel (0) target = $region5
  $region4: #{tpu_custom_call.1} parent=0 // pred_region
    _
  $region5: #{tpu_custom_call.1} parent=0 // pred_fallthru
    _
  // Predicated region
  $region6: #{tpu_custom_call.1} parent=0 // pred_check
    _
  $region7: #{tpu_custom_call.1} parent=0 // pred_check_branch
    %11 = sbr.rel (0) target = $region9
  $region8: #{tpu_custom_call.1} parent=0 // pred_region
    _
  $region9: #{tpu_custom_call.1} parent=0 // pred_fallthru
    _
  // Predicated region
  $region10: #{tpu_custom_call.1} parent=0 // pred_check
    _
  $region11: #{tpu_custom_call.1} parent=0 // pred_check_branch
    %13 = sbr.rel (0) target = $region13
  $region12: #{tpu_custom_call.1} parent=0 // pred_region
    _
  $region13: #{tpu_custom_call.1} parent=0 // pred_fallthru
    _
  %v14 = vld [vmem:[%s1] sm:$0xff]
  %v15 = vld [vmem:[%s0] sm:$0x3]
  %v16 = vld [vmem:[%s2] sm:$0xff]
  %18 = vset.pattern.permute.xlu0 0
  %19 = vperm.xlu0 %18, %v16
  %v20 = vpop.permute.xlu0 %19
  %vm22 = vcmask 523264
  %v24 = vsel %vm22, %v14, 0
  %v27 = vsel %vm22, %v15, 0
  %29 = vmatprep.subr.mxu0 0.0
  %30 = vmatpush1.xpose.msra.mxu0 0.0
  %31 = vmatprep.subr.mxu0 0.0
  %32 = vmatpush1.xpose.msra.mxu0 0.0
  %33 = vmatprep.subr.mxu0 0.0
  %34 = vmatpush1.xpose.msra.mxu0 0.0
  %35 = vmatprep.subr.mxu0 0.0
  %36 = vmatpush1.xpose.msra.mxu0 0.0
  %37 = vmatprep.subr.mxu0 0.0
  %38 = vmatpush1.xpose.msra.mxu0 0.0
  %39 = vmatprep.subr.mxu0 0.0
  %40 = vmatpush1.xpose.msra.mxu0 0.0
  %41 = vmatprep.subr.mxu0 0.0
  %42 = vmatpush1.xpose.msra.mxu0 0.0
  %43 = vmatprep.subr.mxu0 0.0
  %44 = vmatpush1.xpose.msra.mxu0 0.0
  %45 = vmatprep.subr.mxu0 0.0
  %46 = vmatpush1.xpose.msra.mxu0 0.0
  %47 = vmatprep.subr.mxu0 0.0
  %48 = vmatpush1.xpose.msra.mxu0 0.0
  %49 = vmatprep.subr.mxu0 0.0
  %50 = vmatpush1.xpose.msra.mxu0 0.0
  %51 = vmatprep.subr.mxu0 0.0
  %52 = vmatpush1.xpose.msra.mxu0 0.0
  %53 = vmatprep.subr.mxu0 0.0
  %54 = vmatpush1.xpose.msra.mxu0 0.0
  %55 = vmatprep.subr.mxu0 0.0
  %56 = vmatpush1.xpose.msra.mxu0 0.0
  %57 = vmatprep.subr.mxu0 0.0
  %58 = vmatpush1.xpose.msra.mxu0 0.0
  %59 = vmatprep.subr.mxu0 0.0
  %60 = vmatpush1.xpose.msra.mxu0 %v27
  %61 = vmatprep.subr.mxu0 0.0
  %62 = vmatpush2.xpose.msra.mxu0 0.0
  %63 = vmatprep.subr.mxu0 0.0
  %64 = vmatpush2.xpose.msra.mxu0 0.0
  %65 = vmatprep.subr.mxu0 0.0
  %66 = vmatpush2.xpose.msra.mxu0 0.0
  %67 = vmatprep.subr.mxu0 0.0
  %68 = vmatpush2.xpose.msra.mxu0 0.0
  %69 = vmatprep.subr.mxu0 0.0
  %70 = vmatpush2.xpose.msra.mxu0 0.0
  %71 = vmatprep.subr.mxu0 0.0
  %72 = vmatpush2.xpose.msra.mxu0 0.0
  %73 = vmatprep.subr.mxu0 0.0
  %74 = vmatpush2.xpose.msra.mxu0 0.0
  %75 = vmatprep.subr.mxu0 0.0
  %76 = vmatpush2.xpose.msra.mxu0 0.0
  %77 = vmatprep.subr.mxu0 0.0
  %78 = vmatpush2.xpose.msra.mxu0 0.0
  %79 = vmatprep.subr.mxu0 0.0
  %80 = vmatpush2.xpose.msra.mxu0 0.0
  %81 = vmatprep.subr.mxu0 0.0
  %82 = vmatpush2.xpose.msra.mxu0 0.0
  %83 = vmatprep.subr.mxu0 0.0
  %84 = vmatpush2.xpose.msra.mxu0 0.0
  %85 = vmatprep.subr.mxu0 0.0
  %86 = vmatpush2.xpose.msra.mxu0 0.0
  %87 = vmatprep.subr.mxu0 0.0
  %88 = vmatpush2.xpose.msra.mxu0 0.0
  %89 = vmatprep.subr.mxu0 0.0
  %90 = vmatpush2.xpose.msra.mxu0 0.0
  %91 = vmatprep.subr.mxu0 0.0
  %92 = vmatpush2.xpose.msra.mxu0 0.0
  %93 = vmatprep.mubr.f32.mxu0 0.0
  %94 = vmatmul.mubr.f32.gmra.mxu0 %v24
  %v95 = vpop.f32.mrf.mxu0
  %v96 = vadd.f32 %v20, %v95
  %v97 = vpop.f32.mrf.mxu0
  %98 = vdwg.mxu0
  %vm99 = vcmask 15360
  %100 = vst.msk [vmem:[%s3] sm:$0xff] %vm99, %v96
  // Predicated region
  $region14: #{tpu_custom_call.1} parent=0 // pred_check
    _
  $region15: #{tpu_custom_call.1} parent=0 // pred_check_branch
    %102 = sbr.rel (0) target = $region17
  $region16: #{tpu_custom_call.1} parent=0 // pred_region
    _
  $region17: #{tpu_custom_call.1} parent=0 // pred_fallthru
    _
  // Predicated region
  $region18: #{tpu_custom_call.1} parent=0 // pred_check
    _
  $region19: #{tpu_custom_call.1} parent=0 // pred_check_branch
    %104 = sbr.rel (0) target = $region21
  $region20: #{tpu_custom_call.1} parent=0 // pred_region
    _
  $region21: #{tpu_custom_call.1} parent=0 // pred_fallthru
    _

</llo_original>
